<compile_context>
chip_gen: v7x
topology: tpu7x:2x2x1
jax: 0.10.0
libtpu: 0.0.40
codegen_flags: <defaults>
</compile_context>

<pallas_src>
import functools

import jax
import jax.numpy as jnp
from jax import lax
from jax.experimental import pallas as pl
from jax.experimental.pallas import tpu as pltpu

_LANE = 128   # lane width (last dim)
_SUB = 8      # f32 sublane quantum (second-to-last dim)


def _round_up(n: int, m: int) -> int:
    return ((n + m - 1) // m) * m


# --------------------------------------------------------------------------
# Kernel
# --------------------------------------------------------------------------
def mlp_kernel(x_ref, len_ref, w1_ref, b1_ref, w2_ref, b2_ref, out_ref):
    # fc1 on the MXU: bf16 operands, f32 accumulation.
    h = jnp.dot(x_ref[...], w1_ref[...], preferred_element_type=jnp.float32)
    # f32 epilogue: bias + ReLU (keep VPU math in f32 — v5e has no bf16 VPU).
    h = jnp.maximum(h + b1_ref[...], 0.0)
    # Prefix mask rebuilt in-kernel from per-row lengths (no [B, hid] mask DMA).
    col = lax.broadcasted_iota(jnp.int32, h.shape, 1)
    h = jnp.where(col < len_ref[...], h, 0.0)
    # fc2 on the MXU: cast masked activations to bf16, accumulate in f32.
    o = jnp.dot(h.astype(jnp.bfloat16), w2_ref[...],
                preferred_element_type=jnp.float32)
    out_ref[...] = (o + b2_ref[...]).astype(out_ref.dtype)


# --------------------------------------------------------------------------
# Planning (pure Python, uses shapes + hardware info only)
# --------------------------------------------------------------------------
def _plan(batch: int, in_p: int, hid_p: int, out_p: int):
    bf16_b, f32_b = 2, 4
    try:
        phys_vmem = int(pltpu.get_tpu_info().vmem_capacity_bytes)
    except Exception:
        phys_vmem = 64 * 1024 * 1024  # conservative: v7x per-TensorCore size
    # ~3/4 of physical: ~96 MiB on v5e/v6e (128 MiB parts), ~48 MiB on v7x.
    budget = (phys_vmem * 3) // 4

    # Resident (single-buffered) weights/biases.
    weight_bytes = bf16_b * (in_p * hid_p + hid_p * out_p) + f32_b * (hid_p + out_p)
    if weight_bytes > budget - (8 << 20):
        # For layers whose resident weights exceed the per-core VMEM budget
        # (mainly v7x, 64 MiB) a hid_p-reduction grid axis with a f32 VMEM
        # accumulator (pl.when init/writeback) would be needed.
        raise NotImplementedError(
            "Weights too large for the resident-VMEM path; add a hidden-dim "
            "reduction grid axis for this size.")

    # Per batch-row VMEM bytes: double-buffered x (bf16) / out (f32) / lengths
    # (int32) tiles, plus ~6 B/hidden for the in-kernel f32 h and its bf16 cast.
    per_row = 2 * (bf16_b * in_p + f32_b * out_p + 4) + 6 * hid_p
    max_rows = (budget - weight_bytes) // per_row

    block_b = min(_round_up(batch, _SUB), 1024, max(int(max_rows), _SUB))
    if block_b >= 128:
        block_b = (block_b // 128) * 128          # MXU-friendly M
    else:
        block_b = max((block_b // _SUB) * _SUB, _SUB)
    # v7x megacore: keep >= 2 grid steps on the "parallel" axis when possible.
    if batch >= 16:
        block_b = min(block_b, _round_up((batch + 1) // 2, _SUB))

    footprint = weight_bytes + per_row * block_b
    vmem_limit = int(min(budget, max(footprint + (16 << 20), 32 << 20)))
    return block_b, vmem_limit


# --------------------------------------------------------------------------
# Forward
# --------------------------------------------------------------------------
@functools.partial(jax.jit,
                   static_argnames=("out_features", "block_b", "vmem_limit"))
def _mlp_forward_padded(x, lengths, w1p, b1p, w2p, b2p, *,
                        out_features: int, block_b: int, vmem_limit: int):
    B, in_f = x.shape
    in_p, hid_p = w1p.shape
    out_p = w2p.shape[1]
    b_p = _round_up(B, block_b)

    # Activation padding (batch -> multiple of block_b, features already padded).
    xp = jnp.zeros((b_p, in_p), jnp.bfloat16).at[:B, :in_f].set(
        x.astype(jnp.bfloat16))
    lens = jnp.zeros((b_p, 1), jnp.int32).at[:B, 0].set(
        lengths.astype(jnp.int32))

    grid = (b_p // block_b,)

    flops = 2 * b_p * (in_p * hid_p + hid_p * out_p)
    bytes_accessed = (
        2 * (b_p * in_p + in_p * hid_p + hid_p * out_p)   # bf16 x / w1 / w2
        + 4 * (hid_p + out_p + b_p * out_p)                # f32 biases + output
        + 4 * b_p                                          # int32 lengths
    )
    cost = pl.CostEstimate(flops=flops, transcendentals=0,
                           bytes_accessed=bytes_accessed)

    out_padded = pl.pallas_call(
        mlp_kernel,
        out_shape=jax.ShapeDtypeStruct((b_p, out_p), jnp.float32),
        grid=grid,
        in_specs=[
            # Batch-tiled activations / per-row lengths (pipelined).
            pl.BlockSpec((block_b, in_p), lambda i: (i, 0)),
            pl.BlockSpec((block_b, 1), lambda i: (i, 0)),
            # Weights/biases: whole-array, single-buffered, VMEM-resident.
            pl.BlockSpec(memory_space=pltpu.MemorySpace.VMEM),
            pl.BlockSpec(memory_space=pltpu.MemorySpace.VMEM),
            pl.BlockSpec(memory_space=pltpu.MemorySpace.VMEM),
            pl.BlockSpec(memory_space=pltpu.MemorySpace.VMEM),
        ],
        out_specs=pl.BlockSpec((block_b, out_p), lambda i: (i, 0)),
        compiler_params=pltpu.CompilerParams(
            dimension_semantics=("parallel",),   # splits across v7x's 2 TCs
            vmem_limit_bytes=vmem_limit,
        ),
        cost_estimate=cost,
    )(xp, lens, w1p, b1p, w2p, b2p)

    return out_padded[:B, :out_features]


def mlp_forward(x, mask, params):
    """Forward pass matching the PyTorch MLP for prefix/length masks.

    The reference mask is a prefix mask, so only per-row lengths are passed to
    the kernel and the mask is rebuilt in-kernel via an iota compare.  A fully
    general (non-prefix) mask would need the streamed-mask variant instead.
    """
    lengths = jnp.sum(mask != 0, axis=1).astype(jnp.int32)
    in_p, hid_p = params["w1p"].shape
    out_p = params["w2p"].shape[1]
    block_b, vmem_limit = _plan(int(x.shape[0]), in_p, hid_p, out_p)
    return _mlp_forward_padded(
        x, lengths,
        params["w1p"], params["b1p"], params["w2p"], params["b2p"],
        out_features=params["out_features"],
        block_b=block_b, vmem_limit=vmem_limit)


# --------------------------------------------------------------------------
# Parameters
# --------------------------------------------------------------------------
def init_params(key, input_size, hidden_size, output_size):
    """nn.Linear-style U(-1/sqrt(fan_in), 1/sqrt(fan_in)) init, pre-transposed."""
    k1, k2, k3, k4 = jax.random.split(key, 4)
    bound1 = 1.0 / jnp.sqrt(input_size)
    bound2 = 1.0 / jnp.sqrt(hidden_size)
    w1 = jax.random.uniform(k1, (input_size, hidden_size), jnp.float32, -bound1, bound1)
    b1 = jax.random.uniform(k2, (1, hidden_size), jnp.float32, -bound1, bound1)
    w2 = jax.random.uniform(k3, (hidden_size, output_size), jnp.float32, -bound2, bound2)
    b2 = jax.random.uniform(k4, (1, output_size), jnp.float32, -bound2, bound2)
    return w1, b1, w2, b2


def pad_params(w1, b1, w2, b2):
    """One-time lane padding + bf16 cast of the weights (hoisted out of the
    per-call path).  Biases stay f32 for the f32 epilogue."""
    in_f, hidden = w1.shape
    out_f = w2.shape[1]
    in_p, hid_p, out_p = (_round_up(d, _LANE) for d in (in_f, hidden, out_f))
    bf16, f32 = jnp.bfloat16, jnp.float32
    w1p = jnp.zeros((in_p, hid_p), bf16).at[:in_f, :hidden].set(w1.astype(bf16))
    b1p = jnp.zeros((1, hid_p), f32).at[:, :hidden].set(b1.astype(f32))
    w2p = jnp.zeros((hid_p, out_p), bf16).at[:hidden, :out_f].set(w2.astype(bf16))
    b2p = jnp.zeros((1, out_p), f32).at[:, :out_f].set(b2.astype(f32))
    return {"w1p": w1p, "b1p": b1p, "w2p": w2p, "b2p": b2p,
            "in_features": in_f, "hidden": hidden, "out_features": out_f}


# --------------------------------------------------------------------------
# Example / self-check (mirrors the PyTorch script)
# --------------------------------------------------------------------------
if __name__ == "__main__":
    input_size = 10
    hidden_size = 10
    output_size = 1

    key = jax.random.PRNGKey(0)
    k_x, k_p = jax.random.split(key)

    # input_data = torch.randn((5, input_size))
    x = jax.random.normal(k_x, (5, input_size), dtype=jnp.float32)

    # Prefix mask from the PyTorch script ([5, 10]).
    mask = jnp.array(
        [
            [1, 1, 0, 0, 0, 0, 0, 0, 0, 0],
            [1, 1, 1, 0, 0, 0, 0, 0, 0, 0],
            [1, 1, 1, 1, 0, 0, 0, 0, 0, 0],
            [1, 1, 1, 1, 1, 0, 0, 0, 0, 0],
            [1, 1, 1, 1, 1, 1, 0, 0, 0, 0],
        ],
        dtype=jnp.float32,
    )

    w1, b1, w2, b2 = init_params(k_p, input_size, hidden_size, output_size)
    params = pad_params(w1, b1, w2, b2)   # hoisted one-time padding/cast

    out = mlp_forward(x, mask, params)
    jax.block_until_ready(out)
    assert out.shape == (5, output_size)

    # Tight check against a reference using the same bf16 quantization.
    x_bf, w1_bf, w2_bf = (a.astype(jnp.bfloat16) for a in (x, w1, w2))
    h_q = jnp.maximum(
        jnp.dot(x_bf, w1_bf, preferred_element_type=jnp.float32) + b1, 0.0) * mask
    ref_q = jnp.dot(h_q.astype(jnp.bfloat16), w2_bf,
                    preferred_element_type=jnp.float32) + b2
    assert jnp.allclose(out, ref_q, atol=1e-2, rtol=1e-2), (out, ref_q)

    # Looser check against the pure-f32 PyTorch-style reference (bf16 MXU drift).
    h_ref = jnp.maximum(x @ w1 + b1, 0.0) * mask
    ref = h_ref @ w2 + b2
    assert jnp.allclose(out, ref, atol=1e-1, rtol=1e-1), (out, ref)

    print("KERNEL_OK")
</pallas_src>

<mosaic_0001>
module attributes {stable_mosaic.version = 11 : i64} {
  func.func @mlp_kernel(%arg0: i32, %arg1: memref<8x128xbf16, #tpu.memory_space<vmem>>, %arg2: memref<8x1xi32, #tpu.memory_space<vmem>>, %arg3: memref<128x128xbf16, #tpu.memory_space<vmem>>, %arg4: memref<1x128xf32, #tpu.memory_space<vmem>>, %arg5: memref<128x128xbf16, #tpu.memory_space<vmem>>, %arg6: memref<1x128xf32, #tpu.memory_space<vmem>>, %arg7: memref<8x128xf32, #tpu.memory_space<vmem>>) attributes {dimension_semantics = [#tpu.dimension_semantics<parallel>], iteration_bounds = array<i64: 1>, scalar_prefetch = 0 : i64, scratch_operands = 0 : i64, tpu.core_type = #tpu.core_type<tc>, window_params = [{transform_indices = @transform_0, window_bounds = array<i64: 8, 128>}, {transform_indices = @transform_1, window_bounds = array<i64: 8, 1>}, {pipeline_mode = #tpu.pipeline_mode<synchronous>, transform_indices = @transform_2, window_bounds = array<i64: 128, 128>}, {pipeline_mode = #tpu.pipeline_mode<synchronous>, transform_indices = @transform_3, window_bounds = array<i64: 1, 128>}, {pipeline_mode = #tpu.pipeline_mode<synchronous>, transform_indices = @transform_4, window_bounds = array<i64: 128, 128>}, {pipeline_mode = #tpu.pipeline_mode<synchronous>, transform_indices = @transform_5, window_bounds = array<i64: 1, 128>}, {transform_indices = @transform_6, window_bounds = array<i64: 8, 128>}]} {
    %c0 = arith.constant 0 : index
    %c0_0 = arith.constant 0 : index
    %0 = vector.load %arg1[%c0, %c0_0] : memref<8x128xbf16, #tpu.memory_space<vmem>>, vector<8x128xbf16>
    %c0_1 = arith.constant 0 : index
    %c0_2 = arith.constant 0 : index
    %1 = vector.load %arg3[%c0_1, %c0_2] : memref<128x128xbf16, #tpu.memory_space<vmem>>, vector<128x128xbf16>
    %cst = arith.constant dense<0.000000e+00> : vector<8x128xf32>
    %2 = tpu.matmul %0, %1, %cst {dimension_numbers = #tpu.dot_dimension_numbers<[1], [0], [0], [1], [0, 0, 1, 1], [], []>} : vector<8x128xbf16>, vector<128x128xbf16>, vector<8x128xf32> -> vector<8x128xf32>
    %c0_3 = arith.constant 0 : index
    %c0_4 = arith.constant 0 : index
    %3 = vector.load %arg4[%c0_3, %c0_4] : memref<1x128xf32, #tpu.memory_space<vmem>>, vector<1x128xf32>
    %4 = vector.broadcast %3 : vector<1x128xf32> to vector<8x128xf32>
    %5 = arith.addf %2, %4 : vector<8x128xf32>
    %cst_5 = arith.constant 0.000000e+00 : f32
    %6 = vector.broadcast %cst_5 : f32 to vector<8x128xf32>
    %7 = arith.maximumf %5, %6 : vector<8x128xf32>
    %8 = tpu.iota {dimensions = array<i32: 1>} : vector<8x128xi32>
    %c0_6 = arith.constant 0 : index
    %c0_7 = arith.constant 0 : index
    %9 = vector.load %arg2[%c0_6, %c0_7] : memref<8x1xi32, #tpu.memory_space<vmem>>, vector<8x1xi32>
    %10 = vector.broadcast %9 : vector<8x1xi32> to vector<8x128xi32>
    %11 = arith.cmpi slt, %8, %10 : vector<8x128xi32>
    %cst_8 = arith.constant 0.000000e+00 : f32
    %12 = vector.broadcast %cst_8 : f32 to vector<8x128xf32>
    %13 = arith.select %11, %7, %12 : vector<8x128xi1>, vector<8x128xf32>
    %14 = arith.truncf %13 : vector<8x128xf32> to vector<8x128xbf16>
    %c0_9 = arith.constant 0 : index
    %c0_10 = arith.constant 0 : index
    %15 = vector.load %arg5[%c0_9, %c0_10] : memref<128x128xbf16, #tpu.memory_space<vmem>>, vector<128x128xbf16>
    %cst_11 = arith.constant dense<0.000000e+00> : vector<8x128xf32>
    %16 = tpu.matmul %14, %15, %cst_11 {dimension_numbers = #tpu.dot_dimension_numbers<[1], [0], [0], [1], [0, 0, 1, 1], [], []>} : vector<8x128xbf16>, vector<128x128xbf16>, vector<8x128xf32> -> vector<8x128xf32>
    %c0_12 = arith.constant 0 : index
    %c0_13 = arith.constant 0 : index
    %17 = vector.load %arg6[%c0_12, %c0_13] : memref<1x128xf32, #tpu.memory_space<vmem>>, vector<1x128xf32>
    %18 = vector.broadcast %17 : vector<1x128xf32> to vector<8x128xf32>
    %19 = arith.addf %16, %18 : vector<8x128xf32>
    %c0_14 = arith.constant 0 : index
    %c0_15 = arith.constant 0 : index
    %20 = vector.load %arg7[%c0_14, %c0_15] : memref<8x128xf32, #tpu.memory_space<vmem>>, vector<8x128xf32>
    tpu.vector_store %arg7[%c0_14, %c0_15], %19 {strides = array<i32>} : memref<8x128xf32, #tpu.memory_space<vmem>>, vector<8x128xf32>,
    return
  }
  func.func @transform_0(%arg0: i32) -> (i32, i32) {
    %c0_i32 = arith.constant 0 : i32
    %c0_i32_0 = arith.constant 0 : i32
    return %arg0, %c0_i32 : i32, i32
  }
  func.func @transform_1(%arg0: i32) -> (i32, i32) {
    %c0_i32 = arith.constant 0 : i32
    %c0_i32_0 = arith.constant 0 : i32
    return %arg0, %c0_i32 : i32, i32
  }
  func.func @transform_2(%arg0: i32) -> (i32, i32) {
    %c0_i32 = arith.constant 0 : i32
    %c0_i32_0 = arith.constant 0 : i32
    %c0_i32_1 = arith.constant 0 : i32
    return %c0_i32, %c0_i32_0 : i32, i32
  }
  func.func @transform_3(%arg0: i32) -> (i32, i32) {
    %c0_i32 = arith.constant 0 : i32
    %c0_i32_0 = arith.constant 0 : i32
    %c0_i32_1 = arith.constant 0 : i32
    return %c0_i32, %c0_i32_0 : i32, i32
  }
  func.func @transform_4(%arg0: i32) -> (i32, i32) {
    %c0_i32 = arith.constant 0 : i32
    %c0_i32_0 = arith.constant 0 : i32
    %c0_i32_1 = arith.constant 0 : i32
    return %c0_i32, %c0_i32_0 : i32, i32
  }
  func.func @transform_5(%arg0: i32) -> (i32, i32) {
    %c0_i32 = arith.constant 0 : i32
    %c0_i32_0 = arith.constant 0 : i32
    %c0_i32_1 = arith.constant 0 : i32
    return %c0_i32, %c0_i32_0 : i32, i32
  }
  func.func @transform_6(%arg0: i32) -> (i32, i32) {
    %c0_i32 = arith.constant 0 : i32
    %c0_i32_0 = arith.constant 0 : i32
    return %arg0, %c0_i32 : i32, i32
  }
}

</mosaic_0001>

<llo_original>
// kernel: _mlp_forward_padded.1
$region0: #{_mlp_forward_padded.1}
  #allocation0 [shape = 'u32[]', space=smem, size = 0x4, offset = 0x4, fixed_abs, tag = 'smem constant byte address 0x4 - core index']
  #allocation1 [shape = 'u32[144,128]{1,0:T(1,128)}', space=vmem, size = 0x12000, scoped, tag = 'internal scratch']
  %s0 = inlined_call_operand.vmem [shape: bf16[8,128], index: 0, kind: input, shape index: {}]
  %s1 = inlined_call_operand.vmem [shape: s32[8,1], index: 1, kind: input, shape index: {}]
  %s2 = inlined_call_operand.hbm [shape: bf16[128,128], index: 2, kind: input, shape index: {}]
  %s3 = inlined_call_operand.vmem [shape: f32[1,128], index: 3, kind: input, shape index: {}]
  %s4 = inlined_call_operand.vmem [shape: bf16[128,128], index: 4, kind: input, shape index: {}]
  %s5 = inlined_call_operand.vmem [shape: f32[1,128], index: 5, kind: input, shape index: {}]
  %s6 = inlined_call_operand.vmem [shape: f32[8,128], index: 6, kind: output, shape index: {}]
  %s7 = sld [smem:[#allocation0]]
  $region38: #{_mlp_forward_padded.1} parent=0
    _
  %s9 = ssub.s32 1, %s7
  %s10 = scalar_select 0, %s9, %s7
  $region1: #{_mlp_forward_padded.1} parent=0
    #allocation2 [shape = 'u8[32768]{0}', space=vmem, size = 0x8000, scoped, tag = 'input window, operand 2, single buffered']
    #allocation3 [shape = 's32[1]{0}', space=sflag, size = 0x4, scoped, tag = 'scoped memory for _mlp_forward_padded.1']
    %11 = vsyncpa [#allocation3], 0
    // Predicated region
    $region2: #{_mlp_forward_padded.1} parent=1 // pred_check
      _
    $region3: #{_mlp_forward_padded.1} parent=1 // pred_check_branch
      %13 = sbr.rel (0) target = $region5
    $region4: #{_mlp_forward_padded.1} parent=1 // pred_region
      _
    $region5: #{_mlp_forward_padded.1} parent=1 // pred_fallthru
      _
    // Predicated region
    $region6: #{_mlp_forward_padded.1} parent=1 // pred_check
      _
    $region7: #{_mlp_forward_padded.1} parent=1 // pred_check_branch
      %15 = sbr.rel (0) target = $region9
    $region8: #{_mlp_forward_padded.1} parent=1 // pred_region
      _
    $region9: #{_mlp_forward_padded.1} parent=1 // pred_fallthru
      _
    // Predicated region
    $region10: #{_mlp_forward_padded.1} parent=1 // pred_check
      _
    $region11: #{_mlp_forward_padded.1} parent=1 // pred_check_branch
      %17 = sbr.rel (0) target = $region13
    $region12: #{_mlp_forward_padded.1} parent=1 // pred_region
      %s19 = ssub.s32 1024, 1024
      %20 = vsyncadd [#allocation3], %s19
      %s21 = sshll.u32 [#allocation2], 4
      %s22 = int_to_ptr.vmem [resolvable:$true] %s21
      %27 = dma.hbm_to_vmem [thread:$0]  %s2, 1024, %s22, [#allocation3], 64, 64, 4
    $region13: #{_mlp_forward_padded.1} parent=1 // pred_fallthru
      _
    // Predicated region
    $region14: #{_mlp_forward_padded.1} parent=1 // pred_check
      _
    $region15: #{_mlp_forward_padded.1} parent=1 // pred_check_branch
      %29 = sbr.rel (0) target = $region17
    $region16: #{_mlp_forward_padded.1} parent=1 // pred_region
      _
    $region17: #{_mlp_forward_padded.1} parent=1 // pred_fallthru
      _
    // Predicated region
    $region18: #{_mlp_forward_padded.1} parent=1 // pred_check
      _
    $region19: #{_mlp_forward_padded.1} parent=1 // pred_check_branch
      %31 = sbr.rel (0) target = $region21
    $region20: #{_mlp_forward_padded.1} parent=1 // pred_region
      _
    $region21: #{_mlp_forward_padded.1} parent=1 // pred_fallthru
      _
    // Predicated region
    $region22: #{_mlp_forward_padded.1} parent=1 // pred_check
      _
    $region23: #{_mlp_forward_padded.1} parent=1 // pred_check_branch
      %33 = sbr.rel (0) target = $region25
    $region24: #{_mlp_forward_padded.1} parent=1 // pred_region
      _
    $region25: #{_mlp_forward_padded.1} parent=1 // pred_fallthru
      _
    // Predicated region
    $region26: #{_mlp_forward_padded.1} parent=1 // pred_check
      _
    $region27: #{_mlp_forward_padded.1} parent=1 // pred_check_branch
      %35 = sbr.rel (0) target = $region29
    $region28: #{_mlp_forward_padded.1} parent=1 // pred_region
      %36 = dma.done [#allocation3], 1024
    $region29: #{_mlp_forward_padded.1} parent=1 // pred_fallthru
      _
    %v38 = vld [vmem:[%s0] sm:$0xf]
    %v39 = vld [vmem:[#allocation2] sm:$0xf]
    %v40 = vld [vmem:[#allocation2 + $0x4] sm:$0xf]
    %v41 = vld [vmem:[#allocation2 + $0x8] sm:$0xf]
    %v42 = vld [vmem:[#allocation2 + $0xc] sm:$0xf]
    %v43 = vld [vmem:[#allocation2 + $0x10] sm:$0xf]
    %v44 = vld [vmem:[#allocation2 + $0x14] sm:$0xf]
    %v45 = vld [vmem:[#allocation2 + $0x18] sm:$0xf]
    %v46 = vld [vmem:[#allocation2 + $0x1c] sm:$0xf]
    %v47 = vld [vmem:[#allocation2 + $0x20] sm:$0xf]
    %v48 = vld [vmem:[#allocation2 + $0x24] sm:$0xf]
    %v49 = vld [vmem:[#allocation2 + $0x28] sm:$0xf]
    %v50 = vld [vmem:[#allocation2 + $0x2c] sm:$0xf]
    %v51 = vld [vmem:[#allocation2 + $0x30] sm:$0xf]
    %v52 = vld [vmem:[#allocation2 + $0x34] sm:$0xf]
    %v53 = vld [vmem:[#allocation2 + $0x38] sm:$0xf]
    %v54 = vld [vmem:[#allocation2 + $0x3c] sm:$0xf]
    %v55 = vld [vmem:[%s3] sm:$0x1]
    %v57 = vlaneseq
    %v58 = vshrl.u32 %v57, 7
    %v59 = vsub.s32 0, %v58
    %v60 = vrot.slane %v55, %v59
    %v78 = vunpack.c.l.b16 %v39
    %v79 = vunpack.c.l.b16 %v40
    %v80 = vunpack.c.l.b16 %v41
    %v81 = vunpack.c.l.b16 %v42
    %v82 = vunpack.c.l.b16 %v43
    %v83 = vunpack.c.l.b16 %v44
    %v84 = vunpack.c.l.b16 %v45
    %v85 = vunpack.c.l.b16 %v46
    %v86 = vunpack.c.l.b16 %v47
    %v87 = vunpack.c.l.b16 %v48
    %v88 = vunpack.c.l.b16 %v49
    %v89 = vunpack.c.l.b16 %v50
    %v90 = vunpack.c.l.b16 %v51
    %v91 = vunpack.c.l.b16 %v52
    %v92 = vunpack.c.l.b16 %v53
    %v93 = vunpack.c.l.b16 %v54
    %v94 = vpack.c.b16 %v79, %v78
    %v95 = vpack.c.b16 %v81, %v80
    %v96 = vpack.c.b16 %v83, %v82
    %v97 = vpack.c.b16 %v85, %v84
    %v98 = vpack.c.b16 %v87, %v86
    %v99 = vpack.c.b16 %v89, %v88
    %v100 = vpack.c.b16 %v91, %v90
    %v101 = vpack.c.b16 %v93, %v92
    %110 = vmatprep.subr.bf16.mxu0 0
    %111 = vmatpush1.bf16.msra.mxu0 %v94
    %112 = vmatprep.subr.bf16.mxu0 0
    %113 = vmatpush1.bf16.msra.mxu0 %v95
    %114 = vmatprep.subr.bf16.mxu0 0
    %115 = vmatpush1.bf16.msra.mxu0 %v96
    %116 = vmatprep.subr.bf16.mxu0 0
    %117 = vmatpush1.bf16.msra.mxu0 %v97
    %118 = vmatprep.subr.bf16.mxu0 0
    %119 = vmatpush1.bf16.msra.mxu0 %v98
    %120 = vmatprep.subr.bf16.mxu0 0
    %121 = vmatpush1.bf16.msra.mxu0 %v99
    %122 = vmatprep.subr.bf16.mxu0 0
    %123 = vmatpush1.bf16.msra.mxu0 %v100
    %124 = vmatprep.subr.bf16.mxu0 0
    %125 = vmatpush1.bf16.msra.mxu0 %v101
    %126 = vmatprep.subr.bf16.mxu0 0
    %127 = vmatpush1.bf16.msra.mxu0 0
    %128 = vmatprep.subr.bf16.mxu0 0
    %129 = vmatpush1.bf16.msra.mxu0 0
    %130 = vmatprep.subr.bf16.mxu0 0
    %131 = vmatpush1.bf16.msra.mxu0 0
    %132 = vmatprep.subr.bf16.mxu0 0
    %133 = vmatpush1.bf16.msra.mxu0 0
    %134 = vmatprep.subr.bf16.mxu0 0
    %135 = vmatpush1.bf16.msra.mxu0 0
    %136 = vmatprep.subr.bf16.mxu0 0
    %137 = vmatpush1.bf16.msra.mxu0 0
    %138 = vmatprep.subr.bf16.mxu0 0
    %139 = vmatpush1.bf16.msra.mxu0 0
    %140 = vmatprep.subr.bf16.mxu0 0
    %141 = vmatpush1.bf16.msra.mxu0 0
    %142 = vmatprep.mubr.bf16.mxu0 0
    %143 = vmatmul.mubr.bf16.gmra.mrb[0].mxu0 %v38
    %v144 = vpop.f32.mrb[0].mxu0
    %v145 = vadd.f32 %v60, %v144
    %v146 = vpop.f32.mrb[0].mxu0
    %v147 = vpop.f32.mrb[0].mxu0
    %v148 = vpop.f32.mrb[0].mxu0
    %149 = vdwg.mxu0
    %v150 = vmax.f32 %v145, 0.0
    %v151 = vlaneseq
    %v152 = vand.u32 %v151, 127
    %v153 = vld [vmem:[%s1] sm:$0xff]
    %154 = vset.pattern.permute.xlu0 0
    %155 = vperm.xlu0 %154, %v153
    %v156 = vpop.permute.xlu0 %155
    %vm157 = vcmp.lt.s32.totalorder %v152, %v156
    %v158 = vsel %vm157, %v150, 0.0
    %v159 = vpack.c.bf16 %v158, %v158
    %v160 = vld [vmem:[%s4] sm:$0xf]
    %v161 = vld [vmem:[%s4 + $0x4] sm:$0xf]
    %v162 = vld [vmem:[%s4 + $0x8] sm:$0xf]
    %v163 = vld [vmem:[%s4 + $0xc] sm:$0xf]
    %v164 = vld [vmem:[%s4 + $0x10] sm:$0xf]
    %v165 = vld [vmem:[%s4 + $0x14] sm:$0xf]
    %v166 = vld [vmem:[%s4 + $0x18] sm:$0xf]
    %v167 = vld [vmem:[%s4 + $0x1c] sm:$0xf]
    %v168 = vld [vmem:[%s4 + $0x20] sm:$0xf]
    %v169 = vld [vmem:[%s4 + $0x24] sm:$0xf]
    %v170 = vld [vmem:[%s4 + $0x28] sm:$0xf]
    %v171 = vld [vmem:[%s4 + $0x2c] sm:$0xf]
    %v172 = vld [vmem:[%s4 + $0x30] sm:$0xf]
    %v173 = vld [vmem:[%s4 + $0x34] sm:$0xf]
    %v174 = vld [vmem:[%s4 + $0x38] sm:$0xf]
    %v175 = vld [vmem:[%s4 + $0x3c] sm:$0xf]
    %v176 = vld [vmem:[%s5] sm:$0x1]
    %v178 = vlaneseq
    %v179 = vshrl.u32 %v178, 7
    %v180 = vsub.s32 0, %v179
    %v181 = vrot.slane %v176, %v180
    %v199 = vunpack.c.l.b16 %v160
    %v200 = vunpack.c.l.b16 %v161
    %v201 = vunpack.c.l.b16 %v162
    %v202 = vunpack.c.l.b16 %v163
    %v203 = vunpack.c.l.b16 %v164
    %v204 = vunpack.c.l.b16 %v165
    %v205 = vunpack.c.l.b16 %v166
    %v206 = vunpack.c.l.b16 %v167
    %v207 = vunpack.c.l.b16 %v168
    %v208 = vunpack.c.l.b16 %v169
    %v209 = vunpack.c.l.b16 %v170
    %v210 = vunpack.c.l.b16 %v171
    %v211 = vunpack.c.l.b16 %v172
    %v212 = vunpack.c.l.b16 %v173
    %v213 = vunpack.c.l.b16 %v174
    %v214 = vunpack.c.l.b16 %v175
    %v215 = vpack.c.b16 %v200, %v199
    %v216 = vpack.c.b16 %v202, %v201
    %v217 = vpack.c.b16 %v204, %v203
    %v218 = vpack.c.b16 %v206, %v205
    %v219 = vpack.c.b16 %v208, %v207
    %v220 = vpack.c.b16 %v210, %v209
    %v221 = vpack.c.b16 %v212, %v211
    %v222 = vpack.c.b16 %v214, %v213
    %231 = vmatprep.subr.bf16.mxu0 0
    %232 = vmatpush1.bf16.msra.mxu0 %v215
    %233 = vmatprep.subr.bf16.mxu0 0
    %234 = vmatpush1.bf16.msra.mxu0 %v216
    %235 = vmatprep.subr.bf16.mxu0 0
    %236 = vmatpush1.bf16.msra.mxu0 %v217
    %237 = vmatprep.subr.bf16.mxu0 0
    %238 = vmatpush1.bf16.msra.mxu0 %v218
    %239 = vmatprep.subr.bf16.mxu0 0
    %240 = vmatpush1.bf16.msra.mxu0 %v219
    %241 = vmatprep.subr.bf16.mxu0 0
    %242 = vmatpush1.bf16.msra.mxu0 %v220
    %243 = vmatprep.subr.bf16.mxu0 0
    %244 = vmatpush1.bf16.msra.mxu0 %v221
    %245 = vmatprep.subr.bf16.mxu0 0
    %246 = vmatpush1.bf16.msra.mxu0 %v222
    %247 = vmatprep.subr.bf16.mxu0 0
    %248 = vmatpush1.bf16.msra.mxu0 0
    %249 = vmatprep.subr.bf16.mxu0 0
    %250 = vmatpush1.bf16.msra.mxu0 0
    %251 = vmatprep.subr.bf16.mxu0 0
    %252 = vmatpush1.bf16.msra.mxu0 0
    %253 = vmatprep.subr.bf16.mxu0 0
    %254 = vmatpush1.bf16.msra.mxu0 0
    %255 = vmatprep.subr.bf16.mxu0 0
    %256 = vmatpush1.bf16.msra.mxu0 0
    %257 = vmatprep.subr.bf16.mxu0 0
    %258 = vmatpush1.bf16.msra.mxu0 0
    %259 = vmatprep.subr.bf16.mxu0 0
    %260 = vmatpush1.bf16.msra.mxu0 0
    %261 = vmatprep.subr.bf16.mxu0 0
    %262 = vmatpush1.bf16.msra.mxu0 0
    %263 = vmatprep.mubr.bf16.mxu0 0
    %264 = vmatmul.mubr.bf16.gmra.mrb[0].mxu0 %v159
    %v265 = vpop.f32.mrb[0].mxu0
    %v266 = vadd.f32 %v181, %v265
    %v267 = vpop.f32.mrb[0].mxu0
    %v268 = vpop.f32.mrb[0].mxu0
    %v269 = vpop.f32.mrb[0].mxu0
    %270 = vdwg.mxu0
    %271 = vst [vmem:[%s6] sm:$0xff] %v266
    // Predicated region
    $region30: #{_mlp_forward_padded.1} parent=1 // pred_check
      _
    $region31: #{_mlp_forward_padded.1} parent=1 // pred_check_branch
      %273 = sbr.rel (0) target = $region33
    $region32: #{_mlp_forward_padded.1} parent=1 // pred_region
      _
    $region33: #{_mlp_forward_padded.1} parent=1 // pred_fallthru
      _
    // Predicated region
    $region34: #{_mlp_forward_padded.1} parent=1 // pred_check
      _
    $region35: #{_mlp_forward_padded.1} parent=1 // pred_check_branch
      %275 = sbr.rel (0) target = $region37
    $region36: #{_mlp_forward_padded.1} parent=1 // pred_region
      _
    $region37: #{_mlp_forward_padded.1} parent=1 // pred_fallthru
      _
    %276 = vsyncpa [#allocation3], 1

</llo_original>
